<compile_context>
chip_gen: v7x
topology: tpu7x:2x2x1
jax: 0.10.0
libtpu: 0.0.40
codegen_flags: <defaults>
</compile_context>

<pallas_src>
import math
import functools

import jax
import jax.numpy as jnp
from jax.experimental import pallas as pl
from jax.experimental.pallas import tpu as pltpu

# ---- L0 hyperparameters (match module defaults) ----
LAM = 1.0
TEMPERATURE = 2.0 / 3.0
DROPRATE_INIT = 0.2
LIMIT_A = -0.1
LIMIT_B = 1.1
EPSILON = 1e-6


def _round_up(v, m):
    return ((v + m - 1) // m) * m


# --------------------------------------------------------------------------
# Kernel 1: elementwise hard-concrete gating of the weight (used when the
# matmul has >= 2 M tiles, so gating once beats re-gating per M tile).
# --------------------------------------------------------------------------
def _gate_weight_kernel(w_ref, m_ref, e_ref, o_ref, *, inv_t, limit_a, limit_b):
    e = e_ref[...]
    g = (jnp.log(e) - jnp.log(1.0 - e) + m_ref[...]) * inv_t
    z = jnp.clip(jax.nn.sigmoid(g) * (limit_b - limit_a) + limit_a, 0.0, 1.0)
    o_ref[...] = (z * w_ref[...]).astype(o_ref.dtype)


# --------------------------------------------------------------------------
# Kernel 2: tiled matmul (+ bias), with optional in-kernel gating (single
# fused gate-logit stream) and optional K-reduction accumulator.
# --------------------------------------------------------------------------
def _make_matmul_kernel(*, gate_in_kernel, multi_k, compute_dtype, limit_a, limit_b):
    span = limit_b - limit_a

    def kernel(*refs):
        if gate_in_kernel:
            x_ref, w_ref, g_ref, b_ref, o_ref, *rest = refs
        else:
            x_ref, w_ref, b_ref, o_ref, *rest = refs
            g_ref = None

        if multi_k:
            (acc_ref,) = rest
            k = pl.program_id(2)

            @pl.when(k == 0)
            def _():
                acc_ref[...] = jnp.zeros_like(acc_ref)

        if gate_in_kernel:
            # Gate math stays f32 (v5e VPU/EUP have no bf16); only the MXU
            # operand is downcast.  g already includes the /temperature.
            z = jnp.clip(jax.nn.sigmoid(g_ref[...]) * span + limit_a, 0.0, 1.0)
            w_eff = (z * w_ref[...]).astype(compute_dtype)
        else:
            w_eff = w_ref[...]

        part = jnp.dot(x_ref[...], w_eff, preferred_element_type=jnp.float32)

        if multi_k:
            acc_ref[...] += part

            @pl.when(k == pl.num_programs(2) - 1)
            def _():
                o_ref[...] = (acc_ref[...] + b_ref[...]).astype(o_ref.dtype)
        else:
            o_ref[...] = (part + b_ref[...]).astype(o_ref.dtype)

    return kernel


# --------------------------------------------------------------------------
# Wrapper: y = x @ (gate(eps_w, mask_w) * w) + gate(eps_b, mask_b) * b
# Weight-like tensors are stored as (in_features, out_features).
# --------------------------------------------------------------------------
def l0_linear_forward(x, w_t, mask_w_t, eps_w_t, b_pre, mask_b, eps_b,
                      *, tm=512, tn=1024, tk=512, use_bf16_mxu=True,
                      vmem_limit_bytes=48 * 1024 * 1024):
    M, K = x.shape
    K2, N = w_t.shape
    assert K == K2
    assert mask_w_t.shape == (K, N) and eps_w_t.shape == (K, N)
    assert b_pre.shape == (1, N) and mask_b.shape == (1, N) and eps_b.shape == (1, N)

    inv_t = 1.0 / TEMPERATURE
    span = LIMIT_B - LIMIT_A

    # Bias gating is O(N): do it in the fused XLA prologue -> a single (1, N)
    # effective-bias stream into the kernel (drops 2 of the 3 bias DMAs and the
    # bias sigmoid from the kernel).
    g_b = (jnp.log(eps_b) - jnp.log(1.0 - eps_b) + mask_b) * inv_t
    b_eff = jnp.clip(jax.nn.sigmoid(g_b) * span + LIMIT_A, 0.0, 1.0) * b_pre

    # ---- tile plan (sublane multiples of 8/16, lane multiples of 128) ----
    compute_dtype = jnp.bfloat16 if use_bf16_mxu else jnp.float32
    x_bytes = 2 if use_bf16_mxu else 4
    tm = min(tm, _round_up(M, 16 if use_bf16_mxu else 8))
    tn = min(tn, _round_up(N, 128))
    tk = min(tk, _round_up(K, 128))
    # v7x has 2 TensorCores: if the parallel (i, j) grid would collapse to a
    # single program, split j so both cores get work.
    if _round_up(M, tm) == tm and _round_up(N, tn) == tn and tn >= 256:
        tn = _round_up(tn // 2, 128)
    Mp, Np, Kp = _round_up(M, tm), _round_up(N, tn), _round_up(K, tk)
    gm, gn, gk = Mp // tm, Np // tn, Kp // tk

    def pad2(a, r, c, value=0.0):
        # Pad only when needed (avoids an extra HBM round trip per tensor).
        if a.shape == (r, c):
            return a
        return jnp.pad(a, ((0, r - a.shape[0]), (0, c - a.shape[1])),
                       constant_values=value)

    xp = pad2(x, Mp, Kp).astype(compute_dtype)
    bp = pad2(b_eff, 1, Np)

    pregate = gm >= 2  # hoisting the gate pays for itself when weights are reused across M tiles

    if pregate:
        wp = pad2(w_t, Kp, Np)
        mp = pad2(mask_w_t, Kp, Np)
        # eps padded with 0.5 so logit(eps)=0 in the padded region (no -inf);
        # padded w is 0 so the padded w_eff is 0 regardless.
        ep = pad2(eps_w_t, Kp, Np, value=0.5)
        gate_kernel = functools.partial(
            _gate_weight_kernel, inv_t=inv_t, limit_a=LIMIT_A, limit_b=LIMIT_B)
        w_eff = pl.pallas_call(
            gate_kernel,
            out_shape=jax.ShapeDtypeStruct((Kp, Np), compute_dtype),
            grid_spec=pltpu.PrefetchScalarGridSpec(
                num_scalar_prefetch=0,
                grid=(Kp // tk, Np // tn),
                in_specs=[pl.BlockSpec((tk, tn), lambda a, b: (a, b))] * 3,
                out_specs=pl.BlockSpec((tk, tn), lambda a, b: (a, b)),
            ),
            compiler_params=pltpu.CompilerParams(
                dimension_semantics=("parallel", "parallel"),
                vmem_limit_bytes=vmem_limit_bytes),
            cost_estimate=pl.CostEstimate(
                flops=6 * Kp * Np,
                transcendentals=3 * Kp * Np,
                bytes_accessed=3 * 4 * Kp * Np + x_bytes * Kp * Np),
        )(wp, mp, ep)
        weight_inputs = (w_eff,)
        w_stream_bytes = x_bytes          # one compute-dtype stream
    else:
        # Fuse the two gate-logit streams into one in the wrapper (one fewer
        # weight-sized HBM stream + VMEM slab; one sigmoid+mul per element in-kernel).
        wp = pad2(w_t, Kp, Np)
        g_w = (jnp.log(eps_w_t) - jnp.log(1.0 - eps_w_t) + mask_w_t) * inv_t
        gp = pad2(g_w, Kp, Np)
        weight_inputs = (wp, gp)
        w_stream_bytes = 8                # two f32 streams

    kernel = _make_matmul_kernel(
        gate_in_kernel=not pregate, multi_k=gk > 1, compute_dtype=compute_dtype,
        limit_a=LIMIT_A, limit_b=LIMIT_B)

    if gk > 1:
        grid = (gm, gn, gk)
        x_spec = pl.BlockSpec((tm, tk), lambda i, j, k: (i, k))
        w_spec = pl.BlockSpec((tk, tn), lambda i, j, k: (k, j))
        b_spec = pl.BlockSpec((1, tn), lambda i, j, k: (0, j))
        o_spec = pl.BlockSpec((tm, tn), lambda i, j, k: (i, j))
        scratch = [pltpu.VMEM((tm, tn), jnp.float32)]
        semantics = ("parallel", "parallel", "arbitrary")
    else:
        # Single K step: direct store, no accumulator scratch / zero-init / += pass.
        grid = (gm, gn)
        x_spec = pl.BlockSpec((tm, tk), lambda i, j: (i, 0))
        w_spec = pl.BlockSpec((tk, tn), lambda i, j: (0, j))
        b_spec = pl.BlockSpec((1, tn), lambda i, j: (0, j))
        o_spec = pl.BlockSpec((tm, tn), lambda i, j: (i, j))
        scratch = []
        semantics = ("parallel", "parallel")

    cost = pl.CostEstimate(
        flops=2 * Mp * Np * Kp,
        transcendentals=0 if pregate else gm * Kp * Np,
        bytes_accessed=(gn * Mp * Kp * x_bytes          # x re-read once per j
                        + gm * Kp * Np * w_stream_bytes  # weight stream(s) re-read per i
                        + gm * gn * Np * 4               # bias
                        + Mp * Np * 4),                  # output write
    )

    out = pl.pallas_call(
        kernel,
        out_shape=jax.ShapeDtypeStruct((Mp, Np), jnp.float32),
        grid_spec=pltpu.PrefetchScalarGridSpec(
            num_scalar_prefetch=0,
            grid=grid,
            in_specs=[x_spec] + [w_spec] * len(weight_inputs) + [b_spec],
            out_specs=o_spec,
            scratch_shapes=scratch,
        ),
        compiler_params=pltpu.CompilerParams(
            dimension_semantics=semantics,
            vmem_limit_bytes=vmem_limit_bytes),
        cost_estimate=cost,
    )(xp, *weight_inputs, bp)

    if (Mp, Np) != (M, N):
        out = out[:M, :N]
    return out


# --------------------------------------------------------------------------
# Parameter / noise helpers mirroring the PyTorch module.
# --------------------------------------------------------------------------
def init_params(key, in_features, out_features):
    """Mirrors L0_Regularizer.reset_parameters(), stored in (in, out) layout."""
    k_w, k_mw, k_mb = jax.random.split(key, 3)
    bound = math.sqrt(6.0 / (in_features + out_features))      # xavier_uniform_
    w_t = jax.random.uniform(
        k_w, (in_features, out_features), jnp.float32, minval=-bound, maxval=bound)
    b_pre = jnp.zeros((1, out_features), jnp.float32)
    mask_mean = math.log(1.0 - DROPRATE_INIT) - math.log(DROPRATE_INIT)
    mask_w_t = mask_mean + 0.01 * jax.random.normal(
        k_mw, (in_features, out_features), jnp.float32)
    mask_b = mask_mean + 0.01 * jax.random.normal(k_mb, (1, out_features), jnp.float32)
    return w_t, b_pre, mask_w_t, mask_b


def sample_eps(key, shape):
    """get_eps: U(0,1)*(1-2*eps)+eps, drawn deterministically."""
    u = jax.random.uniform(key, shape, jnp.float32)
    return u * (1.0 - 2.0 * EPSILON) + EPSILON


def _reference(x, w_t, mask_w_t, eps_w_t, b_pre, mask_b, eps_b):
    """Pure-JAX reference matching the PyTorch forward exactly (f32)."""
    def gate(eps, m):
        y = jax.nn.sigmoid((jnp.log(eps) - jnp.log(1.0 - eps) + m) / TEMPERATURE)
        return jnp.clip(y * (LIMIT_B - LIMIT_A) + LIMIT_A, 0.0, 1.0)
    w_eff = gate(eps_w_t, mask_w_t) * w_t
    b_eff = gate(eps_b, mask_b) * b_pre
    return x @ w_eff + b_eff


if __name__ == "__main__":
    def run_case(key, M, K, N, use_bf16, tol):
        k_param, k_x, k_ew, k_eb = jax.random.split(key, 4)
        w_t, b_pre, mask_w_t, mask_b = init_params(k_param, K, N)
        x = jax.random.normal(k_x, (M, K), jnp.float32)
        eps_w = sample_eps(k_ew, (K, N))
        eps_b = sample_eps(k_eb, (1, N))
        y = l0_linear_forward(x, w_t, mask_w_t, eps_w, b_pre, mask_b, eps_b,
                              use_bf16_mxu=use_bf16)
        jax.block_until_ready(y)
        y_ref = _reference(x, w_t, mask_w_t, eps_w, b_pre, mask_b, eps_b)
        assert y.shape == (M, N) and y.dtype == jnp.float32
        err = float(jnp.max(jnp.abs(y - y_ref)))
        assert jnp.allclose(y, y_ref, rtol=tol, atol=tol), err

    key = jax.random.PRNGKey(0)
    k1, k2, k3, k4 = jax.random.split(key, 4)

    # 1) module-like small shape, exact f32 semantics (in-kernel gating, single K step)
    run_case(k1, M=8, K=32, N=16, use_bf16=False, tol=1e-4)
    # 2) multiple M tiles + K reduction -> pregated bf16 weight stream + acc scratch
    run_case(k2, M=1024, K=2048, N=256, use_bf16=True, tol=5e-2)
    # 3) single M tile + K reduction -> in-kernel gating (fused gate logit) + acc scratch
    run_case(k3, M=64, K=2048, N=256, use_bf16=True, tol=5e-2)
    # 4) multiple M tiles, single K step -> pregated, no accumulator
    run_case(k4, M=1024, K=128, N=128, use_bf16=True, tol=5e-2)

    print("KERNEL_OK")
</pallas_src>

<mosaic_0001>
module attributes {stable_mosaic.version = 11 : i64} {
  func.func @kernel(%arg0: i32, %arg1: i32, %arg2: memref<8x128xf32, #tpu.memory_space<vmem>>, %arg3: memref<128x128xf32, #tpu.memory_space<vmem>>, %arg4: memref<128x128xf32, #tpu.memory_space<vmem>>, %arg5: memref<1x128xf32, #tpu.memory_space<vmem>>, %arg6: memref<8x128xf32, #tpu.memory_space<vmem>>) attributes {dimension_semantics = [#tpu.dimension_semantics<parallel>, #tpu.dimension_semantics<parallel>], iteration_bounds = array<i64: 1, 1>, scalar_prefetch = 0 : i64, scratch_operands = 0 : i64, tpu.core_type = #tpu.core_type<tc>, window_params = [{transform_indices = @transform_0, window_bounds = array<i64: 8, 128>}, {transform_indices = @transform_1, window_bounds = array<i64: 128, 128>}, {transform_indices = @transform_2, window_bounds = array<i64: 128, 128>}, {transform_indices = @transform_3, window_bounds = array<i64: 1, 128>}, {transform_indices = @transform_4, window_bounds = array<i64: 8, 128>}]} {
    %c0 = arith.constant 0 : index
    %c0_0 = arith.constant 0 : index
    %0 = vector.load %arg4[%c0, %c0_0] : memref<128x128xf32, #tpu.memory_space<vmem>>, vector<128x128xf32>
    %1 = arith.negf %0 : vector<128x128xf32>
    %2 = math.exp %1 : vector<128x128xf32>
    %cst = arith.constant 1.000000e+00 : f32
    %3 = vector.broadcast %cst : f32 to vector<128x128xf32>
    %4 = arith.addf %3, %2 : vector<128x128xf32>
    %5 = arith.divf %3, %4 : vector<128x128xf32>
    %cst_1 = arith.constant 1.200000e+00 : f32
    %6 = vector.broadcast %cst_1 : f32 to vector<128x128xf32>
    %7 = arith.mulf %5, %6 : vector<128x128xf32>
    %cst_2 = arith.constant -1.000000e-01 : f32
    %8 = vector.broadcast %cst_2 : f32 to vector<128x128xf32>
    %9 = arith.addf %7, %8 : vector<128x128xf32>
    %cst_3 = arith.constant 0.000000e+00 : f32
    %cst_4 = arith.constant 1.000000e+00 : f32
    %10 = vector.broadcast %cst_3 : f32 to vector<128x128xf32>
    %11 = arith.maximumf %10, %9 : vector<128x128xf32>
    %12 = vector.broadcast %cst_4 : f32 to vector<128x128xf32>
    %13 = arith.minimumf %12, %11 : vector<128x128xf32>
    %c0_5 = arith.constant 0 : index
    %c0_6 = arith.constant 0 : index
    %14 = vector.load %arg3[%c0_5, %c0_6] : memref<128x128xf32, #tpu.memory_space<vmem>>, vector<128x128xf32>
    %15 = arith.mulf %13, %14 : vector<128x128xf32>
    %c0_7 = arith.constant 0 : index
    %c0_8 = arith.constant 0 : index
    %16 = vector.load %arg2[%c0_7, %c0_8] : memref<8x128xf32, #tpu.memory_space<vmem>>, vector<8x128xf32>
    %cst_9 = arith.constant dense<0.000000e+00> : vector<8x128xf32>
    %17 = tpu.matmul %16, %15, %cst_9 {dimension_numbers = #tpu.dot_dimension_numbers<[1], [0], [0], [1], [0, 0, 1, 1], [], []>} : vector<8x128xf32>, vector<128x128xf32>, vector<8x128xf32> -> vector<8x128xf32>
    %c0_10 = arith.constant 0 : index
    %c0_11 = arith.constant 0 : index
    %18 = vector.load %arg5[%c0_10, %c0_11] : memref<1x128xf32, #tpu.memory_space<vmem>>, vector<1x128xf32>
    %19 = vector.broadcast %18 : vector<1x128xf32> to vector<8x128xf32>
    %20 = arith.addf %17, %19 : vector<8x128xf32>
    %c0_12 = arith.constant 0 : index
    %c0_13 = arith.constant 0 : index
    %21 = vector.load %arg6[%c0_12, %c0_13] : memref<8x128xf32, #tpu.memory_space<vmem>>, vector<8x128xf32>
    tpu.vector_store %arg6[%c0_12, %c0_13], %20 {strides = array<i32>} : memref<8x128xf32, #tpu.memory_space<vmem>>, vector<8x128xf32>,
    return
  }
  func.func @transform_0(%arg0: i32, %arg1: i32) -> (i32, i32) {
    %c0_i32 = arith.constant 0 : i32
    %c0_i32_0 = arith.constant 0 : i32
    return %arg0, %c0_i32 : i32, i32
  }
  func.func @transform_1(%arg0: i32, %arg1: i32) -> (i32, i32) {
    %c0_i32 = arith.constant 0 : i32
    %c0_i32_0 = arith.constant 0 : i32
    return %c0_i32, %arg1 : i32, i32
  }
  func.func @transform_2(%arg0: i32, %arg1: i32) -> (i32, i32) {
    %c0_i32 = arith.constant 0 : i32
    %c0_i32_0 = arith.constant 0 : i32
    return %c0_i32, %arg1 : i32, i32
  }
  func.func @transform_3(%arg0: i32, %arg1: i32) -> (i32, i32) {
    %c0_i32 = arith.constant 0 : i32
    %c0_i32_0 = arith.constant 0 : i32
    return %c0_i32, %arg1 : i32, i32
  }
  func.func @transform_4(%arg0: i32, %arg1: i32) -> (i32, i32) {
    %c0_i32 = arith.constant 0 : i32
    return %arg0, %arg1 : i32, i32
  }
}

</mosaic_0001>

<llo_original>
// kernel: tpu_custom_call.1
$region0: #{tpu_custom_call.1}
  #allocation0 [shape = 'u32[]', space=smem, size = 0x4, offset = 0x4, fixed_abs, tag = 'smem constant byte address 0x4 - core index']
  #allocation1 [shape = 'u32[144,128]{1,0:T(1,128)}', space=vmem, size = 0x12000, scoped, tag = 'internal scratch']
  %s0 = inlined_call_operand.hbm [shape: f32[8,128], index: 0, kind: input, shape index: {}]
  %s1 = inlined_call_operand.hbm [shape: f32[128,128], index: 1, kind: input, shape index: {}]
  %s2 = inlined_call_operand.hbm [shape: f32[128,128], index: 2, kind: input, shape index: {}]
  %s3 = inlined_call_operand.vmem [shape: f32[1,128], index: 3, kind: input, shape index: {}]
  %s4 = inlined_call_operand.hbm [shape: f32[8,128], index: 4, kind: output, shape index: {}]
  %s5 = sld [smem:[#allocation0]]
  $region38: #{tpu_custom_call.1} parent=0
    _
  %s7 = ssub.s32 1, %s5
  %s8 = scalar_select 0, %s7, %s5
  $region1: #{tpu_custom_call.1} parent=0
    #allocation2 [shape = 'u8[4096]{0}', space=vmem, size = 0x1000, scoped, tag = 'input window, operand 0, single buffered']
    #allocation3 [shape = 's32[1]{0}', space=sflag, size = 0x4, scoped, tag = 'scoped memory for tpu_custom_call.1']
    #allocation4 [shape = 's32[1]{0}', space=sflag, size = 0x4, scoped, tag = 'scoped memory for tpu_custom_call.1']
    #allocation5 [shape = 'u8[65536]{0}', space=vmem, size = 0x10000, scoped, tag = 'input window, operand 1, single buffered']
    #allocation6 [shape = 's32[1]{0}', space=sflag, size = 0x4, scoped, tag = 'scoped memory for tpu_custom_call.1']
    #allocation7 [shape = 'u8[65536]{0}', space=vmem, size = 0x10000, scoped, tag = 'input window, operand 2, single buffered']
    #allocation8 [shape = 'u8[4096]{0}', space=vmem, size = 0x1000, scoped, tag = 'output window, operand 0, single buffered']
    %9 = vsyncpa [#allocation3], 0
    %10 = vsyncpa [#allocation6], 0
    %11 = vsyncpa [#allocation4], 0
    // Predicated region
    $region2: #{tpu_custom_call.1} parent=1 // pred_check
      _
    $region3: #{tpu_custom_call.1} parent=1 // pred_check_branch
      %13 = sbr.rel (0) target = $region5
    $region4: #{tpu_custom_call.1} parent=1 // pred_region
      %s15 = ssub.s32 128, 128
      %16 = vsyncadd [#allocation3], %s15
      %s18 = sshll.u32 [#allocation2], 4
      %s19 = int_to_ptr.vmem [resolvable:$true] %s18
      %21 = dma.hbm_to_vmem [thread:$0]  %s0, 128, %s19, [#allocation3]
    $region5: #{tpu_custom_call.1} parent=1 // pred_fallthru
      _
    // Predicated region
    $region6: #{tpu_custom_call.1} parent=1 // pred_check
      _
    $region7: #{tpu_custom_call.1} parent=1 // pred_check_branch
      %23 = sbr.rel (0) target = $region9
    $region8: #{tpu_custom_call.1} parent=1 // pred_region
      %s25 = ssub.s32 2048, 2048
      %26 = vsyncadd [#allocation6], %s25
      %s27 = sshll.u32 [#allocation5], 4
      %s28 = int_to_ptr.vmem [resolvable:$true] %s27
      %33 = dma.hbm_to_vmem [thread:$0]  %s1, 2048, %s28, [#allocation6], 128, 128, 8
    $region9: #{tpu_custom_call.1} parent=1 // pred_fallthru
      _
    // Predicated region
    $region10: #{tpu_custom_call.1} parent=1 // pred_check
      _
    $region11: #{tpu_custom_call.1} parent=1 // pred_check_branch
      %35 = sbr.rel (0) target = $region13
    $region12: #{tpu_custom_call.1} parent=1 // pred_region
      %s37 = ssub.s32 2048, 2048
      %38 = vsyncadd [#allocation6], %s37
      %s39 = sshll.u32 [#allocation7], 4
      %s40 = int_to_ptr.vmem [resolvable:$true] %s39
      %45 = dma.hbm_to_vmem [thread:$0]  %s2, 2048, %s40, [#allocation6], 128, 128, 8
    $region13: #{tpu_custom_call.1} parent=1 // pred_fallthru
      _
    // Predicated region
    $region14: #{tpu_custom_call.1} parent=1 // pred_check
      _
    $region15: #{tpu_custom_call.1} parent=1 // pred_check_branch
      %47 = sbr.rel (0) target = $region17
    $region16: #{tpu_custom_call.1} parent=1 // pred_region
      _
    $region17: #{tpu_custom_call.1} parent=1 // pred_fallthru
      _
    // Predicated region
    $region18: #{tpu_custom_call.1} parent=1 // pred_check
      _
    $region19: #{tpu_custom_call.1} parent=1 // pred_check_branch
      %49 = sbr.rel (0) target = $region21
    $region20: #{tpu_custom_call.1} parent=1 // pred_region
      %50 = dma.done [#allocation3], 128
    $region21: #{tpu_custom_call.1} parent=1 // pred_fallthru
      _
    // Predicated region
    $region22: #{tpu_custom_call.1} parent=1 // pred_check
      _
    $region23: #{tpu_custom_call.1} parent=1 // pred_check_branch
      %52 = sbr.rel (0) target = $region25
    $region24: #{tpu_custom_call.1} parent=1 // pred_region
      %53 = dma.done [#allocation6], 2048
    $region25: #{tpu_custom_call.1} parent=1 // pred_fallthru
      _
    // Predicated region
    $region26: #{tpu_custom_call.1} parent=1 // pred_check
      _
    $region27: #{tpu_custom_call.1} parent=1 // pred_check_branch
      %55 = sbr.rel (0) target = $region29
    $region28: #{tpu_custom_call.1} parent=1 // pred_region
      %56 = dma.done [#allocation6], 2048
    $region29: #{tpu_custom_call.1} parent=1 // pred_fallthru
      _
    %v57 = vld [vmem:[#allocation7] sm:$0xff]
    %v58 = vld [vmem:[#allocation7 + $0x8] sm:$0xff]
    %v59 = vld [vmem:[#allocation7 + $0x10] sm:$0xff]
    %v60 = vld [vmem:[#allocation7 + $0x18] sm:$0xff]
    %v61 = vld [vmem:[#allocation7 + $0x20] sm:$0xff]
    %v62 = vld [vmem:[#allocation7 + $0x28] sm:$0xff]
    %v63 = vld [vmem:[#allocation7 + $0x30] sm:$0xff]
    %v64 = vld [vmem:[#allocation7 + $0x38] sm:$0xff]
    %v65 = vld [vmem:[#allocation7 + $0x40] sm:$0xff]
    %v66 = vld [vmem:[#allocation7 + $0x48] sm:$0xff]
    %v67 = vld [vmem:[#allocation7 + $0x50] sm:$0xff]
    %v68 = vld [vmem:[#allocation7 + $0x58] sm:$0xff]
    %v69 = vld [vmem:[#allocation7 + $0x60] sm:$0xff]
    %v70 = vld [vmem:[#allocation7 + $0x68] sm:$0xff]
    %v71 = vld [vmem:[#allocation7 + $0x70] sm:$0xff]
    %v72 = vld [vmem:[#allocation7 + $0x78] sm:$0xff]
    %v73 = vxor.u32 %v57, 2147483648
    %v74 = vxor.u32 %v58, 2147483648
    %v75 = vxor.u32 %v59, 2147483648
    %v76 = vxor.u32 %v60, 2147483648
    %v77 = vxor.u32 %v61, 2147483648
    %v78 = vxor.u32 %v62, 2147483648
    %v79 = vxor.u32 %v63, 2147483648
    %v80 = vxor.u32 %v64, 2147483648
    %v81 = vxor.u32 %v65, 2147483648
    %v82 = vxor.u32 %v66, 2147483648
    %v83 = vxor.u32 %v67, 2147483648
    %v84 = vxor.u32 %v68, 2147483648
    %v85 = vxor.u32 %v69, 2147483648
    %v86 = vxor.u32 %v70, 2147483648
    %v87 = vxor.u32 %v71, 2147483648
    %v88 = vxor.u32 %v72, 2147483648
    %v89 = vmul.f32 %v73, 1.442695
    %v90 = vpow.pop %v89
    %v91 = vmul.f32 %v74, 1.442695
    %v92 = vpow.pop %v91
    %v93 = vmul.f32 %v75, 1.442695
    %v94 = vpow.pop %v93
    %v95 = vmul.f32 %v76, 1.442695
    %v96 = vpow.pop %v95
    %v97 = vmul.f32 %v77, 1.442695
    %v98 = vpow.pop %v97
    %v99 = vmul.f32 %v78, 1.442695
    %v100 = vpow.pop %v99
    %v101 = vmul.f32 %v79, 1.442695
    %v102 = vpow.pop %v101
    %v103 = vmul.f32 %v80, 1.442695
    %v104 = vpow.pop %v103
    %v105 = vmul.f32 %v81, 1.442695
    %v106 = vpow.pop %v105
    %v107 = vmul.f32 %v82, 1.442695
    %v108 = vpow.pop %v107
    %v109 = vmul.f32 %v83, 1.442695
    %v110 = vpow.pop %v109
    %v111 = vmul.f32 %v84, 1.442695
    %v112 = vpow.pop %v111
    %v113 = vmul.f32 %v85, 1.442695
    %v114 = vpow.pop %v113
    %v115 = vmul.f32 %v86, 1.442695
    %v116 = vpow.pop %v115
    %v117 = vmul.f32 %v87, 1.442695
    %v118 = vpow.pop %v117
    %v119 = vmul.f32 %v88, 1.442695
    %v120 = vpow.pop %v119
    %v121 = vadd.f32 %v90, 1.0
    %v122 = vadd.f32 %v92, 1.0
    %v123 = vadd.f32 %v94, 1.0
    %v124 = vadd.f32 %v96, 1.0
    %v125 = vadd.f32 %v98, 1.0
    %v126 = vadd.f32 %v100, 1.0
    %v127 = vadd.f32 %v102, 1.0
    %v128 = vadd.f32 %v104, 1.0
    %v129 = vadd.f32 %v106, 1.0
    %v130 = vadd.f32 %v108, 1.0
    %v131 = vadd.f32 %v110, 1.0
    %v132 = vadd.f32 %v112, 1.0
    %v133 = vadd.f32 %v114, 1.0
    %v134 = vadd.f32 %v116, 1.0
    %v135 = vadd.f32 %v118, 1.0
    %v136 = vadd.f32 %v120, 1.0
    %v137 = vrcp.pop %v121
    %v138 = vmul.f32 1.0, %v137
    %v139 = vrcp.pop %v122
    %v140 = vmul.f32 1.0, %v139
    %v141 = vrcp.pop %v123
    %v142 = vmul.f32 1.0, %v141
    %v143 = vrcp.pop %v124
    %v144 = vmul.f32 1.0, %v143
    %v145 = vrcp.pop %v125
    %v146 = vmul.f32 1.0, %v145
    %v147 = vrcp.pop %v126
    %v148 = vmul.f32 1.0, %v147
    %v149 = vrcp.pop %v127
    %v150 = vmul.f32 1.0, %v149
    %v151 = vrcp.pop %v128
    %v152 = vmul.f32 1.0, %v151
    %v153 = vrcp.pop %v129
    %v154 = vmul.f32 1.0, %v153
    %v155 = vrcp.pop %v130
    %v156 = vmul.f32 1.0, %v155
    %v157 = vrcp.pop %v131
    %v158 = vmul.f32 1.0, %v157
    %v159 = vrcp.pop %v132
    %v160 = vmul.f32 1.0, %v159
    %v161 = vrcp.pop %v133
    %v162 = vmul.f32 1.0, %v161
    %v163 = vrcp.pop %v134
    %v164 = vmul.f32 1.0, %v163
    %v165 = vrcp.pop %v135
    %v166 = vmul.f32 1.0, %v165
    %v167 = vrcp.pop %v136
    %v168 = vmul.f32 1.0, %v167
    %v169 = vmul.f32 %v138, 1.2
    %v170 = vmul.f32 %v140, 1.2
    %v171 = vmul.f32 %v142, 1.2
    %v172 = vmul.f32 %v144, 1.2
    %v173 = vmul.f32 %v146, 1.2
    %v174 = vmul.f32 %v148, 1.2
    %v175 = vmul.f32 %v150, 1.2
    %v176 = vmul.f32 %v152, 1.2
    %v177 = vmul.f32 %v154, 1.2
    %v178 = vmul.f32 %v156, 1.2
    %v179 = vmul.f32 %v158, 1.2
    %v180 = vmul.f32 %v160, 1.2
    %v181 = vmul.f32 %v162, 1.2
    %v182 = vmul.f32 %v164, 1.2
    %v183 = vmul.f32 %v166, 1.2
    %v184 = vmul.f32 %v168, 1.2
    %v185 = vadd.f32 %v169, -0.1
    %v186 = vadd.f32 %v170, -0.1
    %v187 = vadd.f32 %v171, -0.1
    %v188 = vadd.f32 %v172, -0.1
    %v189 = vadd.f32 %v173, -0.1
    %v190 = vadd.f32 %v174, -0.1
    %v191 = vadd.f32 %v175, -0.1
    %v192 = vadd.f32 %v176, -0.1
    %v193 = vadd.f32 %v177, -0.1
    %v194 = vadd.f32 %v178, -0.1
    %v195 = vadd.f32 %v179, -0.1
    %v196 = vadd.f32 %v180, -0.1
    %v197 = vadd.f32 %v181, -0.1
    %v198 = vadd.f32 %v182, -0.1
    %v199 = vadd.f32 %v183, -0.1
    %v200 = vadd.f32 %v184, -0.1
    %v201 = vmax.f32 %v185, 0.0
    %v202 = vmax.f32 %v186, 0.0
    %v203 = vmax.f32 %v187, 0.0
    %v204 = vmax.f32 %v188, 0.0
    %v205 = vmax.f32 %v189, 0.0
    %v206 = vmax.f32 %v190, 0.0
    %v207 = vmax.f32 %v191, 0.0
    %v208 = vmax.f32 %v192, 0.0
    %v209 = vmax.f32 %v193, 0.0
    %v210 = vmax.f32 %v194, 0.0
    %v211 = vmax.f32 %v195, 0.0
    %v212 = vmax.f32 %v196, 0.0
    %v213 = vmax.f32 %v197, 0.0
    %v214 = vmax.f32 %v198, 0.0
    %v215 = vmax.f32 %v199, 0.0
    %v216 = vmax.f32 %v200, 0.0
    %v217 = vmin.f32 %v201, 1.0
    %v218 = vmin.f32 %v202, 1.0
    %v219 = vmin.f32 %v203, 1.0
    %v220 = vmin.f32 %v204, 1.0
    %v221 = vmin.f32 %v205, 1.0
    %v222 = vmin.f32 %v206, 1.0
    %v223 = vmin.f32 %v207, 1.0
    %v224 = vmin.f32 %v208, 1.0
    %v225 = vmin.f32 %v209, 1.0
    %v226 = vmin.f32 %v210, 1.0
    %v227 = vmin.f32 %v211, 1.0
    %v228 = vmin.f32 %v212, 1.0
    %v229 = vmin.f32 %v213, 1.0
    %v230 = vmin.f32 %v214, 1.0
    %v231 = vmin.f32 %v215, 1.0
    %v232 = vmin.f32 %v216, 1.0
    %v233 = vld [vmem:[#allocation5] sm:$0xff]
    %v234 = vld [vmem:[#allocation5 + $0x8] sm:$0xff]
    %v235 = vld [vmem:[#allocation5 + $0x10] sm:$0xff]
    %v236 = vld [vmem:[#allocation5 + $0x18] sm:$0xff]
    %v237 = vld [vmem:[#allocation5 + $0x20] sm:$0xff]
    %v238 = vld [vmem:[#allocation5 + $0x28] sm:$0xff]
    %v239 = vld [vmem:[#allocation5 + $0x30] sm:$0xff]
    %v240 = vld [vmem:[#allocation5 + $0x38] sm:$0xff]
    %v241 = vld [vmem:[#allocation5 + $0x40] sm:$0xff]
    %v242 = vld [vmem:[#allocation5 + $0x48] sm:$0xff]
    %v243 = vld [vmem:[#allocation5 + $0x50] sm:$0xff]
    %v244 = vld [vmem:[#allocation5 + $0x58] sm:$0xff]
    %v245 = vld [vmem:[#allocation5 + $0x60] sm:$0xff]
    %v246 = vld [vmem:[#allocation5 + $0x68] sm:$0xff]
    %v247 = vld [vmem:[#allocation5 + $0x70] sm:$0xff]
    %v248 = vld [vmem:[#allocation5 + $0x78] sm:$0xff]
    %v249 = vmul.f32 %v217, %v233
    %v250 = vmul.f32 %v218, %v234
    %v251 = vmul.f32 %v219, %v235
    %v252 = vmul.f32 %v220, %v236
    %v253 = vmul.f32 %v221, %v237
    %v254 = vmul.f32 %v222, %v238
    %v255 = vmul.f32 %v223, %v239
    %v256 = vmul.f32 %v224, %v240
    %v257 = vmul.f32 %v225, %v241
    %v258 = vmul.f32 %v226, %v242
    %v259 = vmul.f32 %v227, %v243
    %v260 = vmul.f32 %v228, %v244
    %v261 = vmul.f32 %v229, %v245
    %v262 = vmul.f32 %v230, %v246
    %v263 = vmul.f32 %v231, %v247
    %v264 = vmul.f32 %v232, %v248
    %v265 = vld [vmem:[#allocation2] sm:$0xff]
    %v266 = vld [vmem:[%s3] sm:$0x1]
    %v268 = vlaneseq
    %v269 = vshrl.u32 %v268, 7
    %v270 = vsub.s32 0, %v269
    %v271 = vrot.slane %v266, %v270
    %273 = vmatprep.subr.mxu0 0.0
    %274 = vmatpush1.msra.mxu0 %v249
    %275 = vmatprep.subr.mxu0 0.0
    %276 = vmatpush1.msra.mxu0 %v250
    %277 = vmatprep.subr.mxu0 0.0
    %278 = vmatpush1.msra.mxu0 %v251
    %279 = vmatprep.subr.mxu0 0.0
    %280 = vmatpush1.msra.mxu0 %v252
    %281 = vmatprep.subr.mxu0 0.0
    %282 = vmatpush1.msra.mxu0 %v253
    %283 = vmatprep.subr.mxu0 0.0
    %284 = vmatpush1.msra.mxu0 %v254
    %285 = vmatprep.subr.mxu0 0.0
    %286 = vmatpush1.msra.mxu0 %v255
    %287 = vmatprep.subr.mxu0 0.0
    %288 = vmatpush1.msra.mxu0 %v256
    %289 = vmatprep.subr.mxu0 0.0
    %290 = vmatpush1.msra.mxu0 %v257
    %291 = vmatprep.subr.mxu0 0.0
    %292 = vmatpush1.msra.mxu0 %v258
    %293 = vmatprep.subr.mxu0 0.0
    %294 = vmatpush1.msra.mxu0 %v259
    %295 = vmatprep.subr.mxu0 0.0
    %296 = vmatpush1.msra.mxu0 %v260
    %297 = vmatprep.subr.mxu0 0.0
    %298 = vmatpush1.msra.mxu0 %v261
    %299 = vmatprep.subr.mxu0 0.0
    %300 = vmatpush1.msra.mxu0 %v262
    %301 = vmatprep.subr.mxu0 0.0
    %302 = vmatpush1.msra.mxu0 %v263
    %303 = vmatprep.subr.mxu0 0.0
    %304 = vmatpush1.msra.mxu0 %v264
    %305 = vmatprep.subr.mxu0 0.0
    %306 = vmatpush1.msra.mxu0 0.0
    %307 = vmatprep.subr.mxu0 0.0
    %308 = vmatpush1.msra.mxu0 0.0
    %309 = vmatprep.subr.mxu0 0.0
    %310 = vmatpush1.msra.mxu0 0.0
    %311 = vmatprep.subr.mxu0 0.0
    %312 = vmatpush1.msra.mxu0 0.0
    %313 = vmatprep.subr.mxu0 0.0
    %314 = vmatpush1.msra.mxu0 0.0
    %315 = vmatprep.subr.mxu0 0.0
    %316 = vmatpush1.msra.mxu0 0.0
    %317 = vmatprep.subr.mxu0 0.0
    %318 = vmatpush1.msra.mxu0 0.0
    %319 = vmatprep.subr.mxu0 0.0
    %320 = vmatpush1.msra.mxu0 0.0
    %321 = vmatprep.subr.mxu0 0.0
    %322 = vmatpush1.msra.mxu0 0.0
    %323 = vmatprep.subr.mxu0 0.0
    %324 = vmatpush1.msra.mxu0 0.0
    %325 = vmatprep.subr.mxu0 0.0
    %326 = vmatpush1.msra.mxu0 0.0
    %327 = vmatprep.subr.mxu0 0.0
    %328 = vmatpush1.msra.mxu0 0.0
    %329 = vmatprep.subr.mxu0 0.0
    %330 = vmatpush1.msra.mxu0 0.0
    %331 = vmatprep.subr.mxu0 0.0
    %332 = vmatpush1.msra.mxu0 0.0
    %333 = vmatprep.subr.mxu0 0.0
    %334 = vmatpush1.msra.mxu0 0.0
    %335 = vmatprep.subr.mxu0 0.0
    %336 = vmatpush1.msra.mxu0 0.0
    %337 = vmatprep.mubr.f32.mxu0 0.0
    %338 = vmatmul.mubr.f32.gmra.mrb[0].mxu0 %v265
    %v339 = vpop.f32.mrb[0].mxu0
    %v340 = vadd.f32 %v271, %v339
    %v341 = vpop.f32.mrb[0].mxu0
    %342 = vdwg.mxu0
    %343 = vst [vmem:[#allocation8] sm:$0xff] %v340
    // Predicated region
    $region30: #{tpu_custom_call.1} parent=1 // pred_check
      _
    $region31: #{tpu_custom_call.1} parent=1 // pred_check_branch
      %345 = sbr.rel (0) target = $region33
    $region32: #{tpu_custom_call.1} parent=1 // pred_region
      %s347 = ssub.s32 128, 128
      %348 = vsyncadd [#allocation4], %s347
      %s350 = sshll.u32 [#allocation8], 4
      %s351 = int_to_ptr.vmem [resolvable:$true] %s350
      %353 = dma.vmem_to_hbm [thread:$0]  %s351, 128, %s4, [#allocation4]
    $region33: #{tpu_custom_call.1} parent=1 // pred_fallthru
      _
    // Predicated region
    $region34: #{tpu_custom_call.1} parent=1 // pred_check
      _
    $region35: #{tpu_custom_call.1} parent=1 // pred_check_branch
      %355 = sbr.rel (0) target = $region37
    $region36: #{tpu_custom_call.1} parent=1 // pred_region
      %356 = dma.done [#allocation4], 128
    $region37: #{tpu_custom_call.1} parent=1 // pred_fallthru
      _
    %357 = vsyncpa [#allocation3], 1
    %358 = vsyncpa [#allocation6], 1
    %359 = vsyncpa [#allocation4], 1

</llo_original>
